<compile_context>
chip_gen: v6e
topology: v6e:2x2x1
jax: 0.10.0
libtpu: 0.0.40
codegen_flags: <defaults>
</compile_context>

<pallas_src>
import jax
import jax.numpy as jnp
import numpy as np
from jax.experimental import pallas as pl
from jax.experimental.pallas import tpu as pltpu


def value_block_kernel(
    wc_ref, cb_ref, b2_ref,            # SMEM: BN-folded conv weight/bias, final bias
    x_ref, w1_ref, b1_ref, w2_ref,     # VMEM: x tile (bf16), Linear-1 (bf16), b1, w2
    o_ref,                             # VMEM output tile (TN, 1) f32
):
    TN = x_ref.shape[0]
    CO, C = wc_ref.shape               # 3 value-head channels, C input channels
    HW = w1_ref.shape[1]
    HID = w1_ref.shape[2]              # 32

    # Hoist: load + upcast each input-channel slice of x exactly once
    # (C loads/casts instead of CO*C).  Static lane-dim slices, no relayout.
    xc = [x_ref[:, c * HW:(c + 1) * HW].astype(jnp.float32) for c in range(C)]

    # Linear-1 accumulator seeded with its bias (broadcast (1, 32) -> (TN, 32)).
    h1 = jnp.broadcast_to(b1_ref[...], (TN, HID)).astype(jnp.float32)

    # Fused: 1x1 conv (BN folded, f32 on the VPU) + ReLU + first Linear:
    # one tall (TN, HW) @ (HW, 32) bf16 MXU matmul per conv channel,
    # accumulated in f32.
    for o in range(CO):
        y = cb_ref[o] + wc_ref[o, 0] * xc[0]
        for c in range(1, C):
            y = y + wc_ref[o, c] * xc[c]
        y = jnp.maximum(y, 0.0)                                   # ReLU
        h1 = h1 + jnp.dot(y.astype(jnp.bfloat16), w1_ref[o],
                          preferred_element_type=jnp.float32)

    h1 = jnp.maximum(h1, 0.0)                                     # ReLU
    # Linear(32, 1) as a lane reduction (VPU/XLU) + Tanh (EUP): avoids a
    # 1-column MXU matmul.
    out = jnp.sum(h1 * w2_ref[...], axis=-1, keepdims=True) + b2_ref[0]
    o_ref[...] = jnp.tanh(out)                                    # (TN, 1)


def _cdiv(a, b):
    return (a + b - 1) // b


def _round_up(x, m):
    return _cdiv(x, m) * m


def value_block_forward(x_nchw, params, *, tn=1024, x_dtype=jnp.bfloat16,
                        x_buffers=2):
    """ValueBlock forward with one batch-tiled pallas_call (eval-mode BN)."""
    (wc, bc, gamma, beta, mean, var, w1, b1, w2, b2) = params
    N, C, H, W = x_nchw.shape
    HW = H * W
    CO = wc.shape[0]          # 3
    HID = w1.shape[0]         # 32
    eps = 1e-5

    # Narrow (bf16) activation stream in HBM; upcast to f32 inside the kernel.
    x = x_nchw.reshape(N, C * HW).astype(x_dtype)

    # Fold eval-mode BatchNorm into the 1x1 conv (both affine -> exact).
    bn_scale = gamma / jnp.sqrt(var + eps)
    bn_shift = beta - mean * bn_scale
    wc_eff = (wc * bn_scale[:, None]).astype(jnp.float32)          # (3, C)
    cb_eff = (bc * bn_scale + bn_shift).astype(jnp.float32)        # (3,)

    # Regroup Linear-1 weight (32, 3*HW) -> (3, HW, 32): one tall MXU matmul
    # per conv channel; matches nn.Flatten on NCHW (c*HW + h*W + w) exactly.
    # Kept resident in VMEM as bf16 (native MXU input dtype on v5e/v6e/v7x).
    w1_r = w1.reshape(HID, CO, HW).transpose(1, 2, 0).astype(jnp.bfloat16)
    b1_r = b1.reshape(1, HID).astype(jnp.float32)
    w2_r = w2.reshape(1, HID).astype(jnp.float32)                  # Linear(32,1) weight row
    b2_r = b2.reshape(1).astype(jnp.float32)

    # Batch tiling (16-row granularity for packed bf16 sublanes): clamp the
    # tile to the rounded-up batch, then -- for multi-step grids -- shrink it
    # (best effort) so the step count is even: v7x shards the "parallel" batch
    # axis across its 2 TensorCores and an odd/tiny grid leaves one idle.
    tn = max(16, min(_round_up(tn, 16), _round_up(N, 16)))
    steps = _cdiv(N, tn)
    if steps > 1 and steps % 2 == 1:
        steps += 1
        tn = min(tn, max(16, _round_up(_cdiv(N, steps), 16)))
    n_pad = _round_up(N, tn)
    if n_pad != N:
        x = jnp.pad(x, ((0, n_pad - N), (0, 0)))
    grid = (n_pad // tn,)

    smem = pl.BlockSpec(memory_space=pltpu.MemorySpace.SMEM)
    if x_buffers == 2:   # Pallas default double-buffering.
        x_spec = pl.BlockSpec((tn, C * HW), lambda i: (i, 0))
    else:                # Sweepable: deeper pipelining if the x DMA is exposed.
        x_spec = pl.BlockSpec((tn, C * HW), lambda i: (i, 0),
                              pipeline_mode=pl.Buffered(x_buffers))

    flops = 2 * n_pad * HW * (CO * C + CO * HID) + 2 * n_pad * HID
    bytes_accessed = (x.size * x.dtype.itemsize + w1_r.size * 2 + n_pad * 4
                      + (wc_eff.size + cb_eff.size + 2 * HID + 1) * 4)

    out = pl.pallas_call(
        value_block_kernel,
        out_shape=jax.ShapeDtypeStruct((n_pad, 1), jnp.float32),
        grid_spec=pltpu.PrefetchScalarGridSpec(
            num_scalar_prefetch=0,
            grid=grid,
            in_specs=[
                smem, smem, smem,                                   # wc_eff, cb_eff, b2
                x_spec,                                             # x (batch-tiled)
                pl.BlockSpec((CO, HW, HID), lambda i: (0, 0, 0)),   # w1 (resident, bf16)
                pl.BlockSpec((1, HID), lambda i: (0, 0)),           # b1 (resident)
                pl.BlockSpec((1, HID), lambda i: (0, 0)),           # w2 (resident)
            ],
            out_specs=pl.BlockSpec((tn, 1), lambda i: (i, 0)),
        ),
        compiler_params=pltpu.CompilerParams(
            dimension_semantics=("parallel",),
            vmem_limit_bytes=32 * 1024 * 1024,
        ),
        cost_estimate=pl.CostEstimate(
            flops=flops, transcendentals=n_pad, bytes_accessed=bytes_accessed),
    )(wc_eff, cb_eff, b2_r, x, w1_r, b1_r, w2_r)

    return out[:N]


def value_block_reference(x_nchw, params):
    """Pure-JAX reference mirroring the PyTorch forward (eval-mode BN, f32)."""
    (wc, bc, gamma, beta, mean, var, w1, b1, w2, b2) = params
    eps = 1e-5
    N = x_nchw.shape[0]
    y = jnp.einsum("nchw,oc->nohw", x_nchw, wc) + bc[None, :, None, None]
    y = (y - mean[None, :, None, None]) / jnp.sqrt(var[None, :, None, None] + eps)
    y = y * gamma[None, :, None, None] + beta[None, :, None, None]
    y = jnp.maximum(y, 0.0)
    flat = y.reshape(N, -1)                      # matches nn.Flatten on NCHW
    h1 = jnp.maximum(flat @ w1.T + b1, 0.0)
    return jnp.tanh(h1 @ w2.T + b2)


def make_params(key, in_channels, board_size):
    H, W = board_size
    feat = 3 * H * W
    ks = jax.random.split(key, 8)
    wc = 0.2 * jax.random.normal(ks[0], (3, in_channels), jnp.float32)     # Conv2d 1x1 weight
    bc = 0.1 * jax.random.normal(ks[1], (3,), jnp.float32)                 # Conv2d bias
    gamma = 1.0 + 0.1 * jax.random.normal(ks[2], (3,), jnp.float32)        # BN weight
    beta = 0.1 * jax.random.normal(ks[3], (3,), jnp.float32)               # BN bias
    mean = 0.1 * jax.random.normal(ks[4], (3,), jnp.float32)               # BN running_mean
    var = 1.0 + 0.1 * jnp.abs(jax.random.normal(ks[5], (3,), jnp.float32)) # BN running_var
    w1 = 0.05 * jax.random.normal(ks[6], (32, feat), jnp.float32)          # Linear(3*H*W, 32)
    b1 = 0.05 * jax.random.normal(ks[7], (32,), jnp.float32)
    w2 = 0.3 * jax.random.normal(jax.random.fold_in(key, 99), (1, 32), jnp.float32)  # Linear(32, 1)
    b2 = jnp.array([0.05], jnp.float32)
    return (wc, bc, gamma, beta, mean, var, w1, b1, w2, b2)


if __name__ == "__main__":
    key = jax.random.PRNGKey(0)
    k_x, k_x2, k_p = jax.random.split(key, 3)

    batch, in_channels, board_size = 2, 4, (16, 16)
    params = make_params(k_p, in_channels, board_size)

    # Tolerance: the kernel streams x and feeds the MXU in bf16 (f32 accum),
    # while the reference computes the Linears in f32 -> allow 5e-3.
    atol = rtol = 5e-3

    # Small-batch check (batch=2; tile clamps to the batch, grid=1).
    x = jax.random.normal(k_x, (batch, in_channels, *board_size), jnp.float32)
    out = jax.block_until_ready(value_block_forward(x, params))
    # Reference sees the same bf16-rounded activations the kernel streams.
    x_q = x.astype(jnp.bfloat16).astype(jnp.float32)
    ref = value_block_reference(x_q, params)
    np.testing.assert_allclose(np.asarray(out), np.asarray(ref), atol=atol, rtol=rtol)

    # Larger batch, not a multiple of the tile, to exercise the multi-step grid
    # (even-step adjustment: 3 -> 4 steps), padding/slicing, and pipelined DMA.
    big = 300
    x2 = jax.random.normal(k_x2, (big, in_channels, *board_size), jnp.float32)
    out2 = jax.block_until_ready(value_block_forward(x2, params, tn=128))
    ref2 = value_block_reference(x2.astype(jnp.bfloat16).astype(jnp.float32), params)
    np.testing.assert_allclose(np.asarray(out2), np.asarray(ref2), atol=atol, rtol=rtol)

    print("KERNEL_OK")
</pallas_src>

<mosaic_0001>
module attributes {stable_mosaic.version = 11 : i64} {
  func.func @value_block_kernel(%arg0: i32, %arg1: memref<3x4xf32, #tpu.memory_space<smem>>, %arg2: memref<3xf32, #tpu.memory_space<smem>>, %arg3: memref<1xf32, #tpu.memory_space<smem>>, %arg4: memref<16x1024xbf16, #tpu.memory_space<vmem>>, %arg5: memref<3x256x32xbf16, #tpu.memory_space<vmem>>, %arg6: memref<1x32xf32, #tpu.memory_space<vmem>>, %arg7: memref<1x32xf32, #tpu.memory_space<vmem>>, %arg8: memref<16x1xf32, #tpu.memory_space<vmem>>) attributes {dimension_semantics = [#tpu.dimension_semantics<parallel>], iteration_bounds = array<i64: 1>, scalar_prefetch = 0 : i64, scratch_operands = 0 : i64, tpu.core_type = #tpu.core_type<tc>, window_params = [{transform_indices = @transform_0, window_bounds = array<i64: 3, 4>}, {transform_indices = @transform_1, window_bounds = array<i64: 3>}, {transform_indices = @transform_2, window_bounds = array<i64: 1>}, {transform_indices = @transform_3, window_bounds = array<i64: 16, 1024>}, {pipeline_mode = #tpu.pipeline_mode<synchronous>, transform_indices = @transform_4, window_bounds = array<i64: 3, 256, 32>}, {pipeline_mode = #tpu.pipeline_mode<synchronous>, transform_indices = @transform_5, window_bounds = array<i64: 1, 32>}, {pipeline_mode = #tpu.pipeline_mode<synchronous>, transform_indices = @transform_6, window_bounds = array<i64: 1, 32>}, {transform_indices = @transform_7, window_bounds = array<i64: 16, 1>}]} {
    %c0 = arith.constant 0 : index
    %c0_0 = arith.constant 0 : index
    %0 = vector.load %arg4[%c0, %c0_0] : memref<16x1024xbf16, #tpu.memory_space<vmem>>, vector<16x256xbf16>
    %1 = arith.extf %0 : vector<16x256xbf16> to vector<16x256xf32>
    %c0_1 = arith.constant 0 : index
    %c256 = arith.constant 256 : index
    %2 = vector.load %arg4[%c0_1, %c256] : memref<16x1024xbf16, #tpu.memory_space<vmem>>, vector<16x256xbf16>
    %3 = arith.extf %2 : vector<16x256xbf16> to vector<16x256xf32>
    %c0_2 = arith.constant 0 : index
    %c512 = arith.constant 512 : index
    %4 = vector.load %arg4[%c0_2, %c512] : memref<16x1024xbf16, #tpu.memory_space<vmem>>, vector<16x256xbf16>
    %5 = arith.extf %4 : vector<16x256xbf16> to vector<16x256xf32>
    %c0_3 = arith.constant 0 : index
    %c768 = arith.constant 768 : index
    %6 = vector.load %arg4[%c0_3, %c768] : memref<16x1024xbf16, #tpu.memory_space<vmem>>, vector<16x256xbf16>
    %7 = arith.extf %6 : vector<16x256xbf16> to vector<16x256xf32>
    %c0_4 = arith.constant 0 : index
    %c0_5 = arith.constant 0 : index
    %8 = vector.load %arg6[%c0_4, %c0_5] : memref<1x32xf32, #tpu.memory_space<vmem>>, vector<1x32xf32>
    %9 = vector.shape_cast %8 : vector<1x32xf32> to vector<1x32xf32>
    %10 = vector.broadcast %9 : vector<1x32xf32> to vector<16x32xf32>
    %c0_6 = arith.constant 0 : index
    %11 = memref.load %arg2[%c0_6] : memref<3xf32, #tpu.memory_space<smem>>
    %c0_7 = arith.constant 0 : index
    %c0_8 = arith.constant 0 : index
    %12 = memref.load %arg1[%c0_7, %c0_8] : memref<3x4xf32, #tpu.memory_space<smem>>
    %13 = vector.broadcast %12 : f32 to vector<16x256xf32>
    %14 = arith.mulf %13, %1 : vector<16x256xf32>
    %15 = vector.broadcast %11 : f32 to vector<16x256xf32>
    %16 = arith.addf %15, %14 : vector<16x256xf32>
    %c0_9 = arith.constant 0 : index
    %c1 = arith.constant 1 : index
    %17 = memref.load %arg1[%c0_9, %c1] : memref<3x4xf32, #tpu.memory_space<smem>>
    %18 = vector.broadcast %17 : f32 to vector<16x256xf32>
    %19 = arith.mulf %18, %3 : vector<16x256xf32>
    %20 = arith.addf %16, %19 : vector<16x256xf32>
    %c0_10 = arith.constant 0 : index
    %c2 = arith.constant 2 : index
    %21 = memref.load %arg1[%c0_10, %c2] : memref<3x4xf32, #tpu.memory_space<smem>>
    %22 = vector.broadcast %21 : f32 to vector<16x256xf32>
    %23 = arith.mulf %22, %5 : vector<16x256xf32>
    %24 = arith.addf %20, %23 : vector<16x256xf32>
    %c0_11 = arith.constant 0 : index
    %c3 = arith.constant 3 : index
    %25 = memref.load %arg1[%c0_11, %c3] : memref<3x4xf32, #tpu.memory_space<smem>>
    %26 = vector.broadcast %25 : f32 to vector<16x256xf32>
    %27 = arith.mulf %26, %7 : vector<16x256xf32>
    %28 = arith.addf %24, %27 : vector<16x256xf32>
    %cst = arith.constant 0.000000e+00 : f32
    %29 = vector.broadcast %cst : f32 to vector<16x256xf32>
    %30 = arith.maximumf %28, %29 : vector<16x256xf32>
    %31 = arith.truncf %30 : vector<16x256xf32> to vector<16x256xbf16>
    %c0_12 = arith.constant 0 : index
    %c0_13 = arith.constant 0 : index
    %c0_14 = arith.constant 0 : index
    %32 = vector.load %arg5[%c0_12, %c0_13, %c0_14] : memref<3x256x32xbf16, #tpu.memory_space<vmem>>, vector<1x256x32xbf16>
    %33 = vector.shape_cast %32 : vector<1x256x32xbf16> to vector<256x32xbf16>
    %cst_15 = arith.constant dense<0.000000e+00> : vector<16x32xf32>
    %34 = tpu.matmul %31, %33, %cst_15 {dimension_numbers = #tpu.dot_dimension_numbers<[1], [0], [0], [1], [0, 0, 1, 1], [], []>} : vector<16x256xbf16>, vector<256x32xbf16>, vector<16x32xf32> -> vector<16x32xf32>
    %35 = arith.addf %10, %34 : vector<16x32xf32>
    %c1_16 = arith.constant 1 : index
    %36 = memref.load %arg2[%c1_16] : memref<3xf32, #tpu.memory_space<smem>>
    %c1_17 = arith.constant 1 : index
    %c0_18 = arith.constant 0 : index
    %37 = memref.load %arg1[%c1_17, %c0_18] : memref<3x4xf32, #tpu.memory_space<smem>>
    %38 = vector.broadcast %37 : f32 to vector<16x256xf32>
    %39 = arith.mulf %38, %1 : vector<16x256xf32>
    %40 = vector.broadcast %36 : f32 to vector<16x256xf32>
    %41 = arith.addf %40, %39 : vector<16x256xf32>
    %c1_19 = arith.constant 1 : index
    %c1_20 = arith.constant 1 : index
    %42 = memref.load %arg1[%c1_19, %c1_20] : memref<3x4xf32, #tpu.memory_space<smem>>
    %43 = vector.broadcast %42 : f32 to vector<16x256xf32>
    %44 = arith.mulf %43, %3 : vector<16x256xf32>
    %45 = arith.addf %41, %44 : vector<16x256xf32>
    %c1_21 = arith.constant 1 : index
    %c2_22 = arith.constant 2 : index
    %46 = memref.load %arg1[%c1_21, %c2_22] : memref<3x4xf32, #tpu.memory_space<smem>>
    %47 = vector.broadcast %46 : f32 to vector<16x256xf32>
    %48 = arith.mulf %47, %5 : vector<16x256xf32>
    %49 = arith.addf %45, %48 : vector<16x256xf32>
    %c1_23 = arith.constant 1 : index
    %c3_24 = arith.constant 3 : index
    %50 = memref.load %arg1[%c1_23, %c3_24] : memref<3x4xf32, #tpu.memory_space<smem>>
    %51 = vector.broadcast %50 : f32 to vector<16x256xf32>
    %52 = arith.mulf %51, %7 : vector<16x256xf32>
    %53 = arith.addf %49, %52 : vector<16x256xf32>
    %cst_25 = arith.constant 0.000000e+00 : f32
    %54 = vector.broadcast %cst_25 : f32 to vector<16x256xf32>
    %55 = arith.maximumf %53, %54 : vector<16x256xf32>
    %56 = arith.truncf %55 : vector<16x256xf32> to vector<16x256xbf16>
    %c1_26 = arith.constant 1 : index
    %c0_27 = arith.constant 0 : index
    %c0_28 = arith.constant 0 : index
    %57 = vector.load %arg5[%c1_26, %c0_27, %c0_28] : memref<3x256x32xbf16, #tpu.memory_space<vmem>>, vector<1x256x32xbf16>
    %58 = vector.shape_cast %57 : vector<1x256x32xbf16> to vector<256x32xbf16>
    %cst_29 = arith.constant dense<0.000000e+00> : vector<16x32xf32>
    %59 = tpu.matmul %56, %58, %cst_29 {dimension_numbers = #tpu.dot_dimension_numbers<[1], [0], [0], [1], [0, 0, 1, 1], [], []>} : vector<16x256xbf16>, vector<256x32xbf16>, vector<16x32xf32> -> vector<16x32xf32>
    %60 = arith.addf %35, %59 : vector<16x32xf32>
    %c2_30 = arith.constant 2 : index
    %61 = memref.load %arg2[%c2_30] : memref<3xf32, #tpu.memory_space<smem>>
    %c2_31 = arith.constant 2 : index
    %c0_32 = arith.constant 0 : index
    %62 = memref.load %arg1[%c2_31, %c0_32] : memref<3x4xf32, #tpu.memory_space<smem>>
    %63 = vector.broadcast %62 : f32 to vector<16x256xf32>
    %64 = arith.mulf %63, %1 : vector<16x256xf32>
    %65 = vector.broadcast %61 : f32 to vector<16x256xf32>
    %66 = arith.addf %65, %64 : vector<16x256xf32>
    %c2_33 = arith.constant 2 : index
    %c1_34 = arith.constant 1 : index
    %67 = memref.load %arg1[%c2_33, %c1_34] : memref<3x4xf32, #tpu.memory_space<smem>>
    %68 = vector.broadcast %67 : f32 to vector<16x256xf32>
    %69 = arith.mulf %68, %3 : vector<16x256xf32>
    %70 = arith.addf %66, %69 : vector<16x256xf32>
    %c2_35 = arith.constant 2 : index
    %c2_36 = arith.constant 2 : index
    %71 = memref.load %arg1[%c2_35, %c2_36] : memref<3x4xf32, #tpu.memory_space<smem>>
    %72 = vector.broadcast %71 : f32 to vector<16x256xf32>
    %73 = arith.mulf %72, %5 : vector<16x256xf32>
    %74 = arith.addf %70, %73 : vector<16x256xf32>
    %c2_37 = arith.constant 2 : index
    %c3_38 = arith.constant 3 : index
    %75 = memref.load %arg1[%c2_37, %c3_38] : memref<3x4xf32, #tpu.memory_space<smem>>
    %76 = vector.broadcast %75 : f32 to vector<16x256xf32>
    %77 = arith.mulf %76, %7 : vector<16x256xf32>
    %78 = arith.addf %74, %77 : vector<16x256xf32>
    %cst_39 = arith.constant 0.000000e+00 : f32
    %79 = vector.broadcast %cst_39 : f32 to vector<16x256xf32>
    %80 = arith.maximumf %78, %79 : vector<16x256xf32>
    %81 = arith.truncf %80 : vector<16x256xf32> to vector<16x256xbf16>
    %c2_40 = arith.constant 2 : index
    %c0_41 = arith.constant 0 : index
    %c0_42 = arith.constant 0 : index
    %82 = vector.load %arg5[%c2_40, %c0_41, %c0_42] : memref<3x256x32xbf16, #tpu.memory_space<vmem>>, vector<1x256x32xbf16>
    %83 = vector.shape_cast %82 : vector<1x256x32xbf16> to vector<256x32xbf16>
    %cst_43 = arith.constant dense<0.000000e+00> : vector<16x32xf32>
    %84 = tpu.matmul %81, %83, %cst_43 {dimension_numbers = #tpu.dot_dimension_numbers<[1], [0], [0], [1], [0, 0, 1, 1], [], []>} : vector<16x256xbf16>, vector<256x32xbf16>, vector<16x32xf32> -> vector<16x32xf32>
    %85 = arith.addf %60, %84 : vector<16x32xf32>
    %cst_44 = arith.constant 0.000000e+00 : f32
    %86 = vector.broadcast %cst_44 : f32 to vector<16x32xf32>
    %87 = arith.maximumf %85, %86 : vector<16x32xf32>
    %c0_45 = arith.constant 0 : index
    %c0_46 = arith.constant 0 : index
    %88 = vector.load %arg7[%c0_45, %c0_46] : memref<1x32xf32, #tpu.memory_space<vmem>>, vector<1x32xf32>
    %89 = vector.broadcast %88 : vector<1x32xf32> to vector<16x32xf32>
    %90 = arith.mulf %87, %89 : vector<16x32xf32>
    %cst_47 = arith.constant dense<0.000000e+00> : vector<16xf32>
    %91 = vector.multi_reduction <add>, %90, %cst_47 [1] : vector<16x32xf32> to vector<16xf32>
    %92 = vector.shape_cast %91 : vector<16xf32> to vector<16x1xf32>
    %c0_48 = arith.constant 0 : index
    %93 = memref.load %arg3[%c0_48] : memref<1xf32, #tpu.memory_space<smem>>
    %94 = vector.broadcast %93 : f32 to vector<16x1xf32>
    %95 = arith.addf %92, %94 : vector<16x1xf32>
    %96 = math.tanh %95 : vector<16x1xf32>
    %c0_49 = arith.constant 0 : index
    %c0_50 = arith.constant 0 : index
    %97 = vector.load %arg8[%c0_49, %c0_50] : memref<16x1xf32, #tpu.memory_space<vmem>>, vector<16x1xf32>
    tpu.vector_store %arg8[%c0_49, %c0_50], %96 {strides = array<i32>} : memref<16x1xf32, #tpu.memory_space<vmem>>, vector<16x1xf32>,
    return
  }
  func.func @transform_0(%arg0: i32) -> (i32, i32) {
    %c0_i32 = arith.constant 0 : i32
    %c0_i32_0 = arith.constant 0 : i32
    %c0_i32_1 = arith.constant 0 : i32
    return %c0_i32, %c0_i32_0 : i32, i32
  }
  func.func @transform_1(%arg0: i32) -> i32 {
    %c0_i32 = arith.constant 0 : i32
    %c0_i32_0 = arith.constant 0 : i32
    return %c0_i32 : i32
  }
  func.func @transform_2(%arg0: i32) -> i32 {
    %c0_i32 = arith.constant 0 : i32
    %c0_i32_0 = arith.constant 0 : i32
    return %c0_i32 : i32
  }
  func.func @transform_3(%arg0: i32) -> (i32, i32) {
    %c0_i32 = arith.constant 0 : i32
    %c0_i32_0 = arith.constant 0 : i32
    return %arg0, %c0_i32 : i32, i32
  }
  func.func @transform_4(%arg0: i32) -> (i32, i32, i32) {
    %c0_i32 = arith.constant 0 : i32
    %c0_i32_0 = arith.constant 0 : i32
    %c0_i32_1 = arith.constant 0 : i32
    %c0_i32_2 = arith.constant 0 : i32
    return %c0_i32, %c0_i32_0, %c0_i32_1 : i32, i32, i32
  }
  func.func @transform_5(%arg0: i32) -> (i32, i32) {
    %c0_i32 = arith.constant 0 : i32
    %c0_i32_0 = arith.constant 0 : i32
    %c0_i32_1 = arith.constant 0 : i32
    return %c0_i32, %c0_i32_0 : i32, i32
  }
  func.func @transform_6(%arg0: i32) -> (i32, i32) {
    %c0_i32 = arith.constant 0 : i32
    %c0_i32_0 = arith.constant 0 : i32
    %c0_i32_1 = arith.constant 0 : i32
    return %c0_i32, %c0_i32_0 : i32, i32
  }
  func.func @transform_7(%arg0: i32) -> (i32, i32) {
    %c0_i32 = arith.constant 0 : i32
    %c0_i32_0 = arith.constant 0 : i32
    return %arg0, %c0_i32 : i32, i32
  }
}

</mosaic_0001>

<llo_original>
// kernel: tpu_custom_call.1
$region0: #{tpu_custom_call.1}
  #allocation0 [shape = 'u32[]', space=smem, size = 0x4, offset = 0x4, fixed_abs, tag = 'smem constant byte address 0x4 - core index']
  #allocation1 [shape = 'u32[144,128]{1,0:T(1,128)}', space=vmem, size = 0x12000, scoped, tag = 'internal scratch']
  #allocation2 [shape = 'f32[1]{0:T(128)S(6)}', space=smem, size = 0x200, scoped, tag = 'scoped memory for tpu_custom_call.1']
  %s0 = inlined_call_operand.vmem [shape: f32[3,4], index: 0, kind: input, shape index: {}]
  %s1 = inlined_call_operand.vmem [shape: f32[3], index: 1, kind: input, shape index: {}]
  %s2 = inlined_call_operand.<no memory space> [shape: f32[1], index: 2, kind: input, shape index: {}]
  %s3 = inlined_call_operand.vmem [shape: bf16[16,1024], index: 3, kind: input, shape index: {}]
  %s4 = inlined_call_operand.vmem [shape: bf16[3,256,32], index: 4, kind: input, shape index: {}]
  %s5 = inlined_call_operand.vmem [shape: f32[1,32], index: 5, kind: input, shape index: {}]
  %s6 = inlined_call_operand.vmem [shape: f32[1,32], index: 6, kind: input, shape index: {}]
  %s7 = inlined_call_operand.vmem [shape: f32[16,1], index: 7, kind: output, shape index: {}]
  %s8 = sld [smem:[#allocation0]]
  $region46: #{tpu_custom_call.1} parent=0
    _
  %s10 = ssub.s32 1, %s8
  %s11 = scalar_select 0, %s10, %s8
  %12 = sst [smem:[#allocation2]] %s2
  $region1: #{tpu_custom_call.1} parent=0
    #allocation3 [shape = 'u8[2048]{0}', space=smem, size = 0x800, scoped, tag = 'input window, operand 0, single buffered']
    #allocation4 [shape = 's32[1]{0}', space=sflag, size = 0x4, scoped, tag = 'scoped memory for tpu_custom_call.1']
    #allocation5 [shape = 'u8[512]{0}', space=smem, size = 0x200, scoped, tag = 'input window, operand 1, single buffered']
    #allocation6 [shape = 's32[1]{0}', space=sflag, size = 0x4, scoped, tag = 'scoped memory for tpu_custom_call.1']
    %13 = vsyncpa [#allocation4], 0
    %14 = vsyncpa [#allocation6], 0
    // Predicated region
    $region2: #{tpu_custom_call.1} parent=1 // pred_check
      _
    $region3: #{tpu_custom_call.1} parent=1 // pred_check_branch
      %16 = sbr.rel (0) target = $region5
    $region4: #{tpu_custom_call.1} parent=1 // pred_region
      %s18 = ssub.s32 64, 64
      %19 = vsyncadd [#allocation4], %s18
      %s21 = sshll.u32 %s0, 4
      %s22 = int_to_ptr.vmem [resolvable:$true] %s21
      %24 = dma.vmem_to_smem %s22, 64, [#allocation3], [#allocation4]
    $region5: #{tpu_custom_call.1} parent=1 // pred_fallthru
      _
    // Predicated region
    $region6: #{tpu_custom_call.1} parent=1 // pred_check
      _
    $region7: #{tpu_custom_call.1} parent=1 // pred_check_branch
      %26 = sbr.rel (0) target = $region9
    $region8: #{tpu_custom_call.1} parent=1 // pred_region
      %s28 = ssub.s32 16, 16
      %29 = vsyncadd [#allocation6], %s28
      %s31 = sshll.u32 %s1, 4
      %s32 = int_to_ptr.vmem [resolvable:$true] %s31
      %34 = dma.vmem_to_smem %s32, 16, [#allocation5], [#allocation6]
    $region9: #{tpu_custom_call.1} parent=1 // pred_fallthru
      _
    // Predicated region
    $region10: #{tpu_custom_call.1} parent=1 // pred_check
      _
    $region11: #{tpu_custom_call.1} parent=1 // pred_check_branch
      %36 = sbr.rel (0) target = $region13
    $region12: #{tpu_custom_call.1} parent=1 // pred_region
      _
    $region13: #{tpu_custom_call.1} parent=1 // pred_fallthru
      _
    // Predicated region
    $region14: #{tpu_custom_call.1} parent=1 // pred_check
      _
    $region15: #{tpu_custom_call.1} parent=1 // pred_check_branch
      %38 = sbr.rel (0) target = $region17
    $region16: #{tpu_custom_call.1} parent=1 // pred_region
      _
    $region17: #{tpu_custom_call.1} parent=1 // pred_fallthru
      _
    // Predicated region
    $region18: #{tpu_custom_call.1} parent=1 // pred_check
      _
    $region19: #{tpu_custom_call.1} parent=1 // pred_check_branch
      %40 = sbr.rel (0) target = $region21
    $region20: #{tpu_custom_call.1} parent=1 // pred_region
      _
    $region21: #{tpu_custom_call.1} parent=1 // pred_fallthru
      _
    // Predicated region
    $region22: #{tpu_custom_call.1} parent=1 // pred_check
      _
    $region23: #{tpu_custom_call.1} parent=1 // pred_check_branch
      %42 = sbr.rel (0) target = $region25
    $region24: #{tpu_custom_call.1} parent=1 // pred_region
      _
    $region25: #{tpu_custom_call.1} parent=1 // pred_fallthru
      _
    // Predicated region
    $region26: #{tpu_custom_call.1} parent=1 // pred_check
      _
    $region27: #{tpu_custom_call.1} parent=1 // pred_check_branch
      %44 = sbr.rel (0) target = $region29
    $region28: #{tpu_custom_call.1} parent=1 // pred_region
      _
    $region29: #{tpu_custom_call.1} parent=1 // pred_fallthru
      _
    // Predicated region
    $region30: #{tpu_custom_call.1} parent=1 // pred_check
      _
    $region31: #{tpu_custom_call.1} parent=1 // pred_check_branch
      %46 = sbr.rel (0) target = $region33
    $region32: #{tpu_custom_call.1} parent=1 // pred_region
      %47 = dma.done [#allocation4], 64
    $region33: #{tpu_custom_call.1} parent=1 // pred_fallthru
      _
    // Predicated region
    $region34: #{tpu_custom_call.1} parent=1 // pred_check
      _
    $region35: #{tpu_custom_call.1} parent=1 // pred_check_branch
      %49 = sbr.rel (0) target = $region37
    $region36: #{tpu_custom_call.1} parent=1 // pred_region
      %50 = dma.done [#allocation6], 16
    $region37: #{tpu_custom_call.1} parent=1 // pred_fallthru
      _
    %51 = sfence
    %v53 = vld [vmem:[%s3] sm:$0xff]
    %v54 = vld [vmem:[%s3 + $0x20] sm:$0xff]
    %v55 = vunpack.c.l.bf16 %v53
    %v56 = vunpack.c.h.bf16 %v53
    %v57 = vunpack.c.l.bf16 %v54
    %v58 = vunpack.c.h.bf16 %v54
    %v59 = vld [vmem:[%s3 + $0x8] sm:$0xff]
    %v60 = vld [vmem:[%s3 + $0x28] sm:$0xff]
    %v61 = vunpack.c.l.bf16 %v59
    %v62 = vunpack.c.h.bf16 %v59
    %v63 = vunpack.c.l.bf16 %v60
    %v64 = vunpack.c.h.bf16 %v60
    %v65 = vld [vmem:[%s3 + $0x10] sm:$0xff]
    %v66 = vld [vmem:[%s3 + $0x30] sm:$0xff]
    %v67 = vunpack.c.l.bf16 %v65
    %v68 = vunpack.c.h.bf16 %v65
    %v69 = vunpack.c.l.bf16 %v66
    %v70 = vunpack.c.h.bf16 %v66
    %v71 = vld [vmem:[%s3 + $0x18] sm:$0xff]
    %v72 = vld [vmem:[%s3 + $0x38] sm:$0xff]
    %v73 = vunpack.c.l.bf16 %v71
    %v74 = vunpack.c.h.bf16 %v71
    %v75 = vunpack.c.l.bf16 %v72
    %v76 = vunpack.c.h.bf16 %v72
    %v77 = vld [vmem:[%s5] sm:$0x1]
    %v79 = vlaneseq
    %v80 = vshrl.u32 %v79, 7
    %v81 = vsub.s32 0, %v80
    %v82 = vrot.slane %v77, %v81
    %s84 = sld [smem:[#allocation5]]
    %s85 = sld [smem:[#allocation3]]
    %v86 = vstv %s85
    %v87 = vmul.f32 %v86, %v55
    %v88 = vmul.f32 %v86, %v56
    %v89 = vmul.f32 %v86, %v57
    %v90 = vmul.f32 %v86, %v58
    %v91 = vstv %s84
    %v92 = vadd.f32 %v91, %v87
    %v93 = vadd.f32 %v91, %v88
    %v94 = vadd.f32 %v91, %v89
    %v95 = vadd.f32 %v91, %v90
    %s96 = sld [smem:[#allocation3 + $0x1]]
    %v97 = vstv %s96
    %v98 = vmul.f32 %v97, %v61
    %v99 = vmul.f32 %v97, %v62
    %v100 = vmul.f32 %v97, %v63
    %v101 = vmul.f32 %v97, %v64
    %v102 = vadd.f32 %v92, %v98
    %v103 = vadd.f32 %v93, %v99
    %v104 = vadd.f32 %v94, %v100
    %v105 = vadd.f32 %v95, %v101
    %s106 = sld [smem:[#allocation3 + $0x2]]
    %v107 = vstv %s106
    %v108 = vmul.f32 %v107, %v67
    %v109 = vmul.f32 %v107, %v68
    %v110 = vmul.f32 %v107, %v69
    %v111 = vmul.f32 %v107, %v70
    %v112 = vadd.f32 %v102, %v108
    %v113 = vadd.f32 %v103, %v109
    %v114 = vadd.f32 %v104, %v110
    %v115 = vadd.f32 %v105, %v111
    %s116 = sld [smem:[#allocation3 + $0x3]]
    %v117 = vstv %s116
    %v118 = vmul.f32 %v117, %v73
    %v119 = vmul.f32 %v117, %v74
    %v120 = vmul.f32 %v117, %v75
    %v121 = vmul.f32 %v117, %v76
    %v122 = vadd.f32 %v112, %v118
    %v123 = vadd.f32 %v113, %v119
    %v124 = vadd.f32 %v114, %v120
    %v125 = vadd.f32 %v115, %v121
    %v126 = vmax.f32 %v122, 0.0
    %v127 = vmax.f32 %v123, 0.0
    %v128 = vmax.f32 %v124, 0.0
    %v129 = vmax.f32 %v125, 0.0
    %v130 = vpack.c.bf16 %v128, %v126
    %v131 = vpack.c.bf16 %v129, %v127
    %v132 = vld [vmem:[%s4] sm:$0xf]
    %v133 = vld [vmem:[%s4 + $0x4] sm:$0xf]
    %v134 = vld [vmem:[%s4 + $0x8] sm:$0xf]
    %v135 = vld [vmem:[%s4 + $0xc] sm:$0xf]
    %v136 = vld [vmem:[%s4 + $0x10] sm:$0xf]
    %v137 = vld [vmem:[%s4 + $0x14] sm:$0xf]
    %v138 = vld [vmem:[%s4 + $0x18] sm:$0xf]
    %v139 = vld [vmem:[%s4 + $0x1c] sm:$0xf]
    %v140 = vld [vmem:[%s4 + $0x20] sm:$0xf]
    %v141 = vld [vmem:[%s4 + $0x24] sm:$0xf]
    %v142 = vld [vmem:[%s4 + $0x28] sm:$0xf]
    %v143 = vld [vmem:[%s4 + $0x2c] sm:$0xf]
    %v144 = vld [vmem:[%s4 + $0x30] sm:$0xf]
    %v145 = vld [vmem:[%s4 + $0x34] sm:$0xf]
    %v146 = vld [vmem:[%s4 + $0x38] sm:$0xf]
    %v147 = vld [vmem:[%s4 + $0x3c] sm:$0xf]
    %v148 = vld [vmem:[%s4 + $0x40] sm:$0xf]
    %v149 = vld [vmem:[%s4 + $0x44] sm:$0xf]
    %v150 = vld [vmem:[%s4 + $0x48] sm:$0xf]
    %v151 = vld [vmem:[%s4 + $0x4c] sm:$0xf]
    %v152 = vld [vmem:[%s4 + $0x50] sm:$0xf]
    %v153 = vld [vmem:[%s4 + $0x54] sm:$0xf]
    %v154 = vld [vmem:[%s4 + $0x58] sm:$0xf]
    %v155 = vld [vmem:[%s4 + $0x5c] sm:$0xf]
    %v156 = vld [vmem:[%s4 + $0x60] sm:$0xf]
    %v157 = vld [vmem:[%s4 + $0x64] sm:$0xf]
    %v158 = vld [vmem:[%s4 + $0x68] sm:$0xf]
    %v159 = vld [vmem:[%s4 + $0x6c] sm:$0xf]
    %v160 = vld [vmem:[%s4 + $0x70] sm:$0xf]
    %v161 = vld [vmem:[%s4 + $0x74] sm:$0xf]
    %v162 = vld [vmem:[%s4 + $0x78] sm:$0xf]
    %v163 = vld [vmem:[%s4 + $0x7c] sm:$0xf]
    %v196 = vunpack.c.l.b16 %v132
    %v197 = vunpack.c.l.b16 %v133
    %v198 = vunpack.c.l.b16 %v134
    %v199 = vunpack.c.l.b16 %v135
    %v200 = vunpack.c.l.b16 %v136
    %v201 = vunpack.c.l.b16 %v137
    %v202 = vunpack.c.l.b16 %v138
    %v203 = vunpack.c.l.b16 %v139
    %v204 = vunpack.c.l.b16 %v140
    %v205 = vunpack.c.l.b16 %v141
    %v206 = vunpack.c.l.b16 %v142
    %v207 = vunpack.c.l.b16 %v143
    %v208 = vunpack.c.l.b16 %v144
    %v209 = vunpack.c.l.b16 %v145
    %v210 = vunpack.c.l.b16 %v146
    %v211 = vunpack.c.l.b16 %v147
    %v212 = vunpack.c.l.b16 %v148
    %v213 = vunpack.c.l.b16 %v149
    %v214 = vunpack.c.l.b16 %v150
    %v215 = vunpack.c.l.b16 %v151
    %v216 = vunpack.c.l.b16 %v152
    %v217 = vunpack.c.l.b16 %v153
    %v218 = vunpack.c.l.b16 %v154
    %v219 = vunpack.c.l.b16 %v155
    %v220 = vunpack.c.l.b16 %v156
    %v221 = vunpack.c.l.b16 %v157
    %v222 = vunpack.c.l.b16 %v158
    %v223 = vunpack.c.l.b16 %v159
    %v224 = vunpack.c.l.b16 %v160
    %v225 = vunpack.c.l.b16 %v161
    %v226 = vunpack.c.l.b16 %v162
    %v227 = vunpack.c.l.b16 %v163
    %v228 = vpack.c.b16 %v197, %v196
    %v229 = vpack.c.b16 %v199, %v198
    %v230 = vpack.c.b16 %v201, %v200
    %v231 = vpack.c.b16 %v203, %v202
    %v232 = vpack.c.b16 %v205, %v204
    %v233 = vpack.c.b16 %v207, %v206
    %v234 = vpack.c.b16 %v209, %v208
    %v235 = vpack.c.b16 %v211, %v210
    %v236 = vpack.c.b16 %v213, %v212
    %v237 = vpack.c.b16 %v215, %v214
    %v238 = vpack.c.b16 %v217, %v216
    %v239 = vpack.c.b16 %v219, %v218
    %v240 = vpack.c.b16 %v221, %v220
    %v241 = vpack.c.b16 %v223, %v222
    %v242 = vpack.c.b16 %v225, %v224
    %v243 = vpack.c.b16 %v227, %v226
    %260 = vmatprep.subr.bf16.mxu0 0
    %261 = vmatpush1.bf16.msra.mxu0 %v235
    %262 = vmatprep.subr.bf16.mxu0 0
    %263 = vmatpush1.bf16.msra.mxu0 %v234
    %264 = vmatprep.subr.bf16.mxu0 0
    %265 = vmatpush1.bf16.msra.mxu0 %v233
    %266 = vmatprep.subr.bf16.mxu0 0
    %267 = vmatpush1.bf16.msra.mxu0 %v232
    %268 = vmatprep.subr.bf16.mxu0 0
    %269 = vmatpush1.bf16.msra.mxu0 %v231
    %270 = vmatprep.subr.bf16.mxu0 0
    %271 = vmatpush1.bf16.msra.mxu0 %v230
    %272 = vmatprep.subr.bf16.mxu0 0
    %273 = vmatpush1.bf16.msra.mxu0 %v229
    %274 = vmatprep.subr.bf16.mxu0 0
    %275 = vmatpush1.bf16.msra.mxu0 %v228
    %276 = vmatprep.subr.bf16.mxu0 0
    %277 = vmatpush2.bf16.msra.mxu0 %v243
    %278 = vmatprep.subr.bf16.mxu0 0
    %279 = vmatpush2.bf16.msra.mxu0 %v242
    %280 = vmatprep.subr.bf16.mxu0 0
    %281 = vmatpush2.bf16.msra.mxu0 %v241
    %282 = vmatprep.subr.bf16.mxu0 0
    %283 = vmatpush2.bf16.msra.mxu0 %v240
    %284 = vmatprep.subr.bf16.mxu0 0
    %285 = vmatpush2.bf16.msra.mxu0 %v239
    %286 = vmatprep.subr.bf16.mxu0 0
    %287 = vmatpush2.bf16.msra.mxu0 %v238
    %288 = vmatprep.subr.bf16.mxu0 0
    %289 = vmatpush2.bf16.msra.mxu0 %v237
    %290 = vmatprep.subr.bf16.mxu0 0
    %291 = vmatpush2.bf16.msra.mxu0 %v236
    %292 = vmatprep.mubr.bf16.mxu0 %v131
    %293 = vmatmul.mubr.bf16.gmra.mxu0 %v130
    %v294 = vpop.f32.mrf.mxu0
    %v295 = vadd.f32 0.0, %v294
    %v296 = vpop.f32.mrf.mxu0
    %v297 = vpop.f32.mrf.mxu0
    %v298 = vadd.f32 0.0, %v297
    %v299 = vpop.f32.mrf.mxu0
    %300 = vdwg.mxu0
    %v301 = vadd.f32 %v82, %v295
    %v302 = vadd.f32 %v82, %v298
    %s303 = sld [smem:[#allocation5 + $0x1]]
    %s304 = sld [smem:[#allocation3 + $0x80]]
    %v305 = vstv %s304
    %v306 = vmul.f32 %v305, %v55
    %v307 = vmul.f32 %v305, %v56
    %v308 = vmul.f32 %v305, %v57
    %v309 = vmul.f32 %v305, %v58
    %v310 = vstv %s303
    %v311 = vadd.f32 %v310, %v306
    %v312 = vadd.f32 %v310, %v307
    %v313 = vadd.f32 %v310, %v308
    %v314 = vadd.f32 %v310, %v309
    %s315 = sld [smem:[#allocation3 + $0x81]]
    %v316 = vstv %s315
    %v317 = vmul.f32 %v316, %v61
    %v318 = vmul.f32 %v316, %v62
    %v319 = vmul.f32 %v316, %v63
    %v320 = vmul.f32 %v316, %v64
    %v321 = vadd.f32 %v311, %v317
    %v322 = vadd.f32 %v312, %v318
    %v323 = vadd.f32 %v313, %v319
    %v324 = vadd.f32 %v314, %v320
    %s325 = sld [smem:[#allocation3 + $0x82]]
    %v326 = vstv %s325
    %v327 = vmul.f32 %v326, %v67
    %v328 = vmul.f32 %v326, %v68
    %v329 = vmul.f32 %v326, %v69
    %v330 = vmul.f32 %v326, %v70
    %v331 = vadd.f32 %v321, %v327
    %v332 = vadd.f32 %v322, %v328
    %v333 = vadd.f32 %v323, %v329
    %v334 = vadd.f32 %v324, %v330
    %s335 = sld [smem:[#allocation3 + $0x83]]
    %v336 = vstv %s335
    %v337 = vmul.f32 %v336, %v73
    %v338 = vmul.f32 %v336, %v74
    %v339 = vmul.f32 %v336, %v75
    %v340 = vmul.f32 %v336, %v76
    %v341 = vadd.f32 %v331, %v337
    %v342 = vadd.f32 %v332, %v338
    %v343 = vadd.f32 %v333, %v339
    %v344 = vadd.f32 %v334, %v340
    %v345 = vmax.f32 %v341, 0.0
    %v346 = vmax.f32 %v342, 0.0
    %v347 = vmax.f32 %v343, 0.0
    %v348 = vmax.f32 %v344, 0.0
    %v349 = vpack.c.bf16 %v347, %v345
    %v350 = vpack.c.bf16 %v348, %v346
    %s351 = scalar_lea.vmem %s4, 128
    %v352 = vld [vmem:[%s351] sm:$0xf]
    %v353 = vld [vmem:[%s351 + $0x4] sm:$0xf]
    %v354 = vld [vmem:[%s351 + $0x8] sm:$0xf]
    %v355 = vld [vmem:[%s351 + $0xc] sm:$0xf]
    %v356 = vld [vmem:[%s351 + $0x10] sm:$0xf]
    %v357 = vld [vmem:[%s351 + $0x14] sm:$0xf]
    %v358 = vld [vmem:[%s351 + $0x18] sm:$0xf]
    %v359 = vld [vmem:[%s351 + $0x1c] sm:$0xf]
    %v360 = vld [vmem:[%s351 + $0x20] sm:$0xf]
    %v361 = vld [vmem:[%s351 + $0x24] sm:$0xf]
    %v362 = vld [vmem:[%s351 + $0x28] sm:$0xf]
    %v363 = vld [vmem:[%s351 + $0x2c] sm:$0xf]
    %v364 = vld [vmem:[%s351 + $0x30] sm:$0xf]
    %v365 = vld [vmem:[%s351 + $0x34] sm:$0xf]
    %v366 = vld [vmem:[%s351 + $0x38] sm:$0xf]
    %v367 = vld [vmem:[%s351 + $0x3c] sm:$0xf]
    %v368 = vld [vmem:[%s351 + $0x40] sm:$0xf]
    %v369 = vld [vmem:[%s351 + $0x44] sm:$0xf]
    %v370 = vld [vmem:[%s351 + $0x48] sm:$0xf]
    %v371 = vld [vmem:[%s351 + $0x4c] sm:$0xf]
    %v372 = vld [vmem:[%s351 + $0x50] sm:$0xf]
    %v373 = vld [vmem:[%s351 + $0x54] sm:$0xf]
    %v374 = vld [vmem:[%s351 + $0x58] sm:$0xf]
    %v375 = vld [vmem:[%s351 + $0x5c] sm:$0xf]
    %v376 = vld [vmem:[%s351 + $0x60] sm:$0xf]
    %v377 = vld [vmem:[%s351 + $0x64] sm:$0xf]
    %v378 = vld [vmem:[%s351 + $0x68] sm:$0xf]
    %v379 = vld [vmem:[%s351 + $0x6c] sm:$0xf]
    %v380 = vld [vmem:[%s351 + $0x70] sm:$0xf]
    %v381 = vld [vmem:[%s351 + $0x74] sm:$0xf]
    %v382 = vld [vmem:[%s351 + $0x78] sm:$0xf]
    %v383 = vld [vmem:[%s351 + $0x7c] sm:$0xf]
    %v416 = vunpack.c.l.b16 %v352
    %v417 = vunpack.c.l.b16 %v353
    %v418 = vunpack.c.l.b16 %v354
    %v419 = vunpack.c.l.b16 %v355
    %v420 = vunpack.c.l.b16 %v356
    %v421 = vunpack.c.l.b16 %v357
    %v422 = vunpack.c.l.b16 %v358
    %v423 = vunpack.c.l.b16 %v359
    %v424 = vunpack.c.l.b16 %v360
    %v425 = vunpack.c.l.b16 %v361
    %v426 = vunpack.c.l.b16 %v362
    %v427 = vunpack.c.l.b16 %v363
    %v428 = vunpack.c.l.b16 %v364
    %v429 = vunpack.c.l.b16 %v365
    %v430 = vunpack.c.l.b16 %v366
    %v431 = vunpack.c.l.b16 %v367
    %v432 = vunpack.c.l.b16 %v368
    %v433 = vunpack.c.l.b16 %v369
    %v434 = vunpack.c.l.b16 %v370
    %v435 = vunpack.c.l.b16 %v371
    %v436 = vunpack.c.l.b16 %v372
    %v437 = vunpack.c.l.b16 %v373
    %v438 = vunpack.c.l.b16 %v374
    %v439 = vunpack.c.l.b16 %v375
    %v440 = vunpack.c.l.b16 %v376
    %v441 = vunpack.c.l.b16 %v377
    %v442 = vunpack.c.l.b16 %v378
    %v443 = vunpack.c.l.b16 %v379
    %v444 = vunpack.c.l.b16 %v380
    %v445 = vunpack.c.l.b16 %v381
    %v446 = vunpack.c.l.b16 %v382
    %v447 = vunpack.c.l.b16 %v383
    %v448 = vpack.c.b16 %v417, %v416
    %v449 = vpack.c.b16 %v419, %v418
    %v450 = vpack.c.b16 %v421, %v420
    %v451 = vpack.c.b16 %v423, %v422
    %v452 = vpack.c.b16 %v425, %v424
    %v453 = vpack.c.b16 %v427, %v426
    %v454 = vpack.c.b16 %v429, %v428
    %v455 = vpack.c.b16 %v431, %v430
    %v456 = vpack.c.b16 %v433, %v432
    %v457 = vpack.c.b16 %v435, %v434
    %v458 = vpack.c.b16 %v437, %v436
    %v459 = vpack.c.b16 %v439, %v438
    %v460 = vpack.c.b16 %v441, %v440
    %v461 = vpack.c.b16 %v443, %v442
    %v462 = vpack.c.b16 %v445, %v444
    %v463 = vpack.c.b16 %v447, %v446
    %480 = vmatprep.subr.bf16.mxu0 0
    %481 = vmatpush1.bf16.msra.mxu0 %v455
    %482 = vmatprep.subr.bf16.mxu0 0
    %483 = vmatpush1.bf16.msra.mxu0 %v454
    %484 = vmatprep.subr.bf16.mxu0 0
    %485 = vmatpush1.bf16.msra.mxu0 %v453
    %486 = vmatprep.subr.bf16.mxu0 0
    %487 = vmatpush1.bf16.msra.mxu0 %v452
    %488 = vmatprep.subr.bf16.mxu0 0
    %489 = vmatpush1.bf16.msra.mxu0 %v451
    %490 = vmatprep.subr.bf16.mxu0 0
    %491 = vmatpush1.bf16.msra.mxu0 %v450
    %492 = vmatprep.subr.bf16.mxu0 0
    %493 = vmatpush1.bf16.msra.mxu0 %v449
    %494 = vmatprep.subr.bf16.mxu0 0
    %495 = vmatpush1.bf16.msra.mxu0 %v448
    %496 = vmatprep.subr.bf16.mxu0 0
    %497 = vmatpush2.bf16.msra.mxu0 %v463
    %498 = vmatprep.subr.bf16.mxu0 0
    %499 = vmatpush2.bf16.msra.mxu0 %v462
    %500 = vmatprep.subr.bf16.mxu0 0
    %501 = vmatpush2.bf16.msra.mxu0 %v461
    %502 = vmatprep.subr.bf16.mxu0 0
    %503 = vmatpush2.bf16.msra.mxu0 %v460
    %504 = vmatprep.subr.bf16.mxu0 0
    %505 = vmatpush2.bf16.msra.mxu0 %v459
    %506 = vmatprep.subr.bf16.mxu0 0
    %507 = vmatpush2.bf16.msra.mxu0 %v458
    %508 = vmatprep.subr.bf16.mxu0 0
    %509 = vmatpush2.bf16.msra.mxu0 %v457
    %510 = vmatprep.subr.bf16.mxu0 0
    %511 = vmatpush2.bf16.msra.mxu0 %v456
    %512 = vmatprep.mubr.bf16.mxu0 %v350
    %513 = vmatmul.mubr.bf16.gmra.mxu0 %v349
    %v514 = vpop.f32.mrf.mxu0
    %v515 = vadd.f32 0.0, %v514
    %v516 = vpop.f32.mrf.mxu0
    %v517 = vpop.f32.mrf.mxu0
    %v518 = vadd.f32 0.0, %v517
    %v519 = vpop.f32.mrf.mxu0
    %520 = vdwg.mxu0
    %v521 = vadd.f32 %v301, %v515
    %v522 = vadd.f32 %v302, %v518
    %s523 = sld [smem:[#allocation5 + $0x2]]
    %s524 = sld [smem:[#allocation3 + $0x100]]
    %v525 = vstv %s524
    %v526 = vmul.f32 %v525, %v55
    %v527 = vmul.f32 %v525, %v56
    %v528 = vmul.f32 %v525, %v57
    %v529 = vmul.f32 %v525, %v58
    %v530 = vstv %s523
    %v531 = vadd.f32 %v530, %v526
    %v532 = vadd.f32 %v530, %v527
    %v533 = vadd.f32 %v530, %v528
    %v534 = vadd.f32 %v530, %v529
    %s535 = sld [smem:[#allocation3 + $0x101]]
    %v536 = vstv %s535
    %v537 = vmul.f32 %v536, %v61
    %v538 = vmul.f32 %v536, %v62
    %v539 = vmul.f32 %v536, %v63
    %v540 = vmul.f32 %v536, %v64
    %v541 = vadd.f32 %v531, %v537
    %v542 = vadd.f32 %v532, %v538
    %v543 = vadd.f32 %v533, %v539
    %v544 = vadd.f32 %v534, %v540
    %s545 = sld [smem:[#allocation3 + $0x102]]
    %v546 = vstv %s545
    %v547 = vmul.f32 %v546, %v67
    %v548 = vmul.f32 %v546, %v68
    %v549 = vmul.f32 %v546, %v69
    %v550 = vmul.f32 %v546, %v70
    %v551 = vadd.f32 %v541, %v547
    %v552 = vadd.f32 %v542, %v548
    %v553 = vadd.f32 %v543, %v549
    %v554 = vadd.f32 %v544, %v550
    %s555 = sld [smem:[#allocation3 + $0x103]]
    %v556 = vstv %s555
    %v557 = vmul.f32 %v556, %v73
    %v558 = vmul.f32 %v556, %v74
    %v559 = vmul.f32 %v556, %v75
    %v560 = vmul.f32 %v556, %v76
    %v561 = vadd.f32 %v551, %v557
    %v562 = vadd.f32 %v552, %v558
    %v563 = vadd.f32 %v553, %v559
    %v564 = vadd.f32 %v554, %v560
    %v565 = vmax.f32 %v561, 0.0
    %v566 = vmax.f32 %v562, 0.0
    %v567 = vmax.f32 %v563, 0.0
    %v568 = vmax.f32 %v564, 0.0
    %v569 = vpack.c.bf16 %v567, %v565
    %v570 = vpack.c.bf16 %v568, %v566
    %s571 = scalar_lea.vmem %s4, 256
    %v572 = vld [vmem:[%s571] sm:$0xf]
    %v573 = vld [vmem:[%s571 + $0x4] sm:$0xf]
    %v574 = vld [vmem:[%s571 + $0x8] sm:$0xf]
    %v575 = vld [vmem:[%s571 + $0xc] sm:$0xf]
    %v576 = vld [vmem:[%s571 + $0x10] sm:$0xf]
    %v577 = vld [vmem:[%s571 + $0x14] sm:$0xf]
    %v578 = vld [vmem:[%s571 + $0x18] sm:$0xf]
    %v579 = vld [vmem:[%s571 + $0x1c] sm:$0xf]
    %v580 = vld [vmem:[%s571 + $0x20] sm:$0xf]
    %v581 = vld [vmem:[%s571 + $0x24] sm:$0xf]
    %v582 = vld [vmem:[%s571 + $0x28] sm:$0xf]
    %v583 = vld [vmem:[%s571 + $0x2c] sm:$0xf]
    %v584 = vld [vmem:[%s571 + $0x30] sm:$0xf]
    %v585 = vld [vmem:[%s571 + $0x34] sm:$0xf]
    %v586 = vld [vmem:[%s571 + $0x38] sm:$0xf]
    %v587 = vld [vmem:[%s571 + $0x3c] sm:$0xf]
    %v588 = vld [vmem:[%s571 + $0x40] sm:$0xf]
    %v589 = vld [vmem:[%s571 + $0x44] sm:$0xf]
    %v590 = vld [vmem:[%s571 + $0x48] sm:$0xf]
    %v591 = vld [vmem:[%s571 + $0x4c] sm:$0xf]
    %v592 = vld [vmem:[%s571 + $0x50] sm:$0xf]
    %v593 = vld [vmem:[%s571 + $0x54] sm:$0xf]
    %v594 = vld [vmem:[%s571 + $0x58] sm:$0xf]
    %v595 = vld [vmem:[%s571 + $0x5c] sm:$0xf]
    %v596 = vld [vmem:[%s571 + $0x60] sm:$0xf]
    %v597 = vld [vmem:[%s571 + $0x64] sm:$0xf]
    %v598 = vld [vmem:[%s571 + $0x68] sm:$0xf]
    %v599 = vld [vmem:[%s571 + $0x6c] sm:$0xf]
    %v600 = vld [vmem:[%s571 + $0x70] sm:$0xf]
    %v601 = vld [vmem:[%s571 + $0x74] sm:$0xf]
    %v602 = vld [vmem:[%s571 + $0x78] sm:$0xf]
    %v603 = vld [vmem:[%s571 + $0x7c] sm:$0xf]
    %v636 = vunpack.c.l.b16 %v572
    %v637 = vunpack.c.l.b16 %v573
    %v638 = vunpack.c.l.b16 %v574
    %v639 = vunpack.c.l.b16 %v575
    %v640 = vunpack.c.l.b16 %v576
    %v641 = vunpack.c.l.b16 %v577
    %v642 = vunpack.c.l.b16 %v578
    %v643 = vunpack.c.l.b16 %v579
    %v644 = vunpack.c.l.b16 %v580
    %v645 = vunpack.c.l.b16 %v581
    %v646 = vunpack.c.l.b16 %v582
    %v647 = vunpack.c.l.b16 %v583
    %v648 = vunpack.c.l.b16 %v584
    %v649 = vunpack.c.l.b16 %v585
    %v650 = vunpack.c.l.b16 %v586
    %v651 = vunpack.c.l.b16 %v587
    %v652 = vunpack.c.l.b16 %v588
    %v653 = vunpack.c.l.b16 %v589
    %v654 = vunpack.c.l.b16 %v590
    %v655 = vunpack.c.l.b16 %v591
    %v656 = vunpack.c.l.b16 %v592
    %v657 = vunpack.c.l.b16 %v593
    %v658 = vunpack.c.l.b16 %v594
    %v659 = vunpack.c.l.b16 %v595
    %v660 = vunpack.c.l.b16 %v596
    %v661 = vunpack.c.l.b16 %v597
    %v662 = vunpack.c.l.b16 %v598
    %v663 = vunpack.c.l.b16 %v599
    %v664 = vunpack.c.l.b16 %v600
    %v665 = vunpack.c.l.b16 %v601
    %v666 = vunpack.c.l.b16 %v602
    %v667 = vunpack.c.l.b16 %v603
    %v668 = vpack.c.b16 %v637, %v636
    %v669 = vpack.c.b16 %v639, %v638
    %v670 = vpack.c.b16 %v641, %v640
    %v671 = vpack.c.b16 %v643, %v642
    %v672 = vpack.c.b16 %v645, %v644
    %v673 = vpack.c.b16 %v647, %v646
    %v674 = vpack.c.b16 %v649, %v648
    %v675 = vpack.c.b16 %v651, %v650
    %v676 = vpack.c.b16 %v653, %v652
    %v677 = vpack.c.b16 %v655, %v654
    %v678 = vpack.c.b16 %v657, %v656
    %v679 = vpack.c.b16 %v659, %v658
    %v680 = vpack.c.b16 %v661, %v660
    %v681 = vpack.c.b16 %v663, %v662
    %v682 = vpack.c.b16 %v665, %v664
    %v683 = vpack.c.b16 %v667, %v666
    %700 = vmatprep.subr.bf16.mxu0 0
    %701 = vmatpush1.bf16.msra.mxu0 %v675
    %702 = vmatprep.subr.bf16.mxu0 0
    %703 = vmatpush1.bf16.msra.mxu0 %v674
    %704 = vmatprep.subr.bf16.mxu0 0
    %705 = vmatpush1.bf16.msra.mxu0 %v673
    %706 = vmatprep.subr.bf16.mxu0 0
    %707 = vmatpush1.bf16.msra.mxu0 %v672
    %708 = vmatprep.subr.bf16.mxu0 0
    %709 = vmatpush1.bf16.msra.mxu0 %v671
    %710 = vmatprep.subr.bf16.mxu0 0
    %711 = vmatpush1.bf16.msra.mxu0 %v670
    %712 = vmatprep.subr.bf16.mxu0 0
    %713 = vmatpush1.bf16.msra.mxu0 %v669
    %714 = vmatprep.subr.bf16.mxu0 0
    %715 = vmatpush1.bf16.msra.mxu0 %v668
    %716 = vmatprep.subr.bf16.mxu0 0
    %717 = vmatpush2.bf16.msra.mxu0 %v683
    %718 = vmatprep.subr.bf16.mxu0 0
    %719 = vmatpush2.bf16.msra.mxu0 %v682
    %720 = vmatprep.subr.bf16.mxu0 0
    %721 = vmatpush2.bf16.msra.mxu0 %v681
    %722 = vmatprep.subr.bf16.mxu0 0
    %723 = vmatpush2.bf16.msra.mxu0 %v680
    %724 = vmatprep.subr.bf16.mxu0 0
    %725 = vmatpush2.bf16.msra.mxu0 %v679
    %726 = vmatprep.subr.bf16.mxu0 0
    %727 = vmatpush2.bf16.msra.mxu0 %v678
    %728 = vmatprep.subr.bf16.mxu0 0
    %729 = vmatpush2.bf16.msra.mxu0 %v677
    %730 = vmatprep.subr.bf16.mxu0 0
    %731 = vmatpush2.bf16.msra.mxu0 %v676
    %732 = vmatprep.mubr.bf16.mxu0 %v570
    %733 = vmatmul.mubr.bf16.gmra.mxu0 %v569
    %v734 = vpop.f32.mrf.mxu0
    %v735 = vadd.f32 0.0, %v734
    %v736 = vpop.f32.mrf.mxu0
    %v737 = vpop.f32.mrf.mxu0
    %v738 = vadd.f32 0.0, %v737
    %v739 = vpop.f32.mrf.mxu0
    %740 = vdwg.mxu0
    %v741 = vadd.f32 %v521, %v735
    %v742 = vadd.f32 %v522, %v738
    %v743 = vmax.f32 %v741, 0.0
    %v744 = vmax.f32 %v742, 0.0
    %v745 = vld [vmem:[%s6] sm:$0x1]
    %v747 = vlaneseq
    %v748 = vshrl.u32 %v747, 7
    %v749 = vsub.s32 0, %v748
    %v750 = vrot.slane %v745, %v749
    %v752 = vmul.f32 %v743, %v750
    %v753 = vmul.f32 %v744, %v750
    %vm754 = vcmask 261120
    %v755 = vsel %vm754, %v752, 0.0
    %756 = vadd.xlane.f32.xlu0 %v755
    %v757 = vpop.xlane.xlu0 %756
    %v758 = vsel %vm754, %v753, 0.0
    %759 = vadd.xlane.f32.xlu0 %v758
    %v760 = vpop.xlane.xlu0 %759
    %s761 = sld [smem:[#allocation2]]
    %v762 = vstv %s761
    %v763 = vadd.f32 %v757, %v762
    %v764 = vadd.f32 %v760, %v762
    %v765 = vtanh.pop %v763
    %v766 = vtanh.pop %v764
    %vm767 = vcmask 7168
    %768 = vst.msk [vmem:[%s7] sm:$0xff] %vm767, %v765
    %769 = vst.msk [vmem:[%s7 + $0x8] sm:$0xff] %vm767, %v766
    // Predicated region
    $region38: #{tpu_custom_call.1} parent=1 // pred_check
      _
    $region39: #{tpu_custom_call.1} parent=1 // pred_check_branch
      %771 = sbr.rel (0) target = $region41
    $region40: #{tpu_custom_call.1} parent=1 // pred_region
      _
    $region41: #{tpu_custom_call.1} parent=1 // pred_fallthru
      _
    // Predicated region
    $region42: #{tpu_custom_call.1} parent=1 // pred_check
      _
    $region43: #{tpu_custom_call.1} parent=1 // pred_check_branch
      %773 = sbr.rel (0) target = $region45
    $region44: #{tpu_custom_call.1} parent=1 // pred_region
      _
    $region45: #{tpu_custom_call.1} parent=1 // pred_fallthru
      _
    %774 = vsyncpa [#allocation4], 1
    %775 = vsyncpa [#allocation6], 1

</llo_original>
